<compile_context>
chip_gen: v6e
topology: v6e:2x2x1
jax: 0.10.0
libtpu: 0.0.40
codegen_flags: <defaults>
</compile_context>

<pallas_src>
import functools

import numpy as np
import jax
import jax.numpy as jnp
from jax.experimental import pallas as pl
from jax.experimental.pallas import tpu as pltpu


# ----------------------------- kernel bodies ---------------------------------

def _bcast_sublane_kernel(x_ref, o_ref):
    """x_ref: (tp, 1, suffix) -> o_ref: (tp, dim_size, suffix). Sublane broadcast."""
    o_ref[...] = jnp.broadcast_to(x_ref[...], o_ref.shape)


def _bcast_lane_kernel(x_ref, o_ref):
    """x_ref: (tp, 1) -> o_ref: (tp, dim_size). Lane broadcast (new axis is last)."""
    o_ref[...] = jnp.broadcast_to(x_ref[...], o_ref.shape)


def _tile_lane_kernel(x_ref, o_ref, *, dim_size, suffix):
    """x_ref: (tp, suffix) -> o_ref: (tp, dim_size*suffix), suffix < 128.

    The (dim_size, suffix) axes are contiguous in the output, so the flat row is
    just `dim_size` back-to-back copies of the input row.  Static lane-offset
    slice stores keep the out block lane-dense without any in-kernel reshape.
    """
    x = x_ref[...]
    # TODO(synk): for very large dim_size with tiny suffix, a single tiled store
    # (jnp.tile) would cut vst count; kept as unrolled slice stores for robustness.
    for d in range(dim_size):
        o_ref[:, d * suffix:(d + 1) * suffix] = x


# ------------------------------- wrapper --------------------------------------

def _round_up(a, b):
    return ((a + b - 1) // b) * b


def _expand_one(x, dim_size, dim):
    """Unsqueeze `x` at `dim` and broadcast the new axis to `dim_size` (Pallas)."""
    ndim_out = x.ndim + 1
    pos = dim % ndim_out                       # torch.unsqueeze dim normalization
    pre = tuple(x.shape[:pos])
    post = tuple(x.shape[pos:])
    out_shape = pre + (dim_size,) + post

    prefix = int(np.prod(pre, dtype=np.int64)) if pre else 1
    suffix = int(np.prod(post, dtype=np.int64)) if post else 1

    # Empty tensors: nothing to copy.
    if prefix == 0 or suffix == 0 or dim_size == 0:
        return jnp.zeros(out_shape, x.dtype)

    itemsize = jnp.dtype(x.dtype).itemsize
    sub = {4: 8, 2: 16, 1: 32}.get(itemsize, 8)       # packed sublane multiple
    lane = 128

    use_3d = suffix >= lane                           # lanes already dense

    # Padded per-prefix-row VMEM bytes (input block + output block).
    if use_3d:
        in_row = sub * _round_up(suffix, lane) * itemsize            # (1,suffix) pads to (sub, ru)
        out_row = _round_up(dim_size, sub) * _round_up(suffix, lane) * itemsize
    else:
        flat_w = dim_size * suffix
        in_row = _round_up(suffix, lane) * itemsize
        out_row = _round_up(flat_w, lane) * itemsize

    # Prefix tile: biggest that keeps the double-buffered working set ~8 MiB,
    # but small enough to give ~8 grid steps (pipelining + v7x megacore) when possible.
    budget = 8 << 20
    per_row = 2 * (in_row + out_row)                  # x2 for double buffering
    tp = max(1, min(prefix, budget // per_row, max(1, pl.cdiv(prefix, 8))))
    if (not use_3d) and tp < prefix:
        # 2-D blocks: second-minor (tp) must be a multiple of the packed sublane count.
        tp = (tp // sub) * sub
        if tp == 0:
            tp = min(prefix, sub)
    grid = (pl.cdiv(prefix, tp),)                     # ragged last block handled by Pallas

    need = tp * per_row
    vmem_limit = int(min(max(int(need * 1.5) + (1 << 20), 16 << 20), 64 << 20))
    cparams = pltpu.CompilerParams(
        dimension_semantics=("parallel",),
        vmem_limit_bytes=vmem_limit,
    )

    if use_3d:
        # New axis on sublanes; suffix stays on lanes (dense stores, dense HBM writes).
        x3 = x.reshape(prefix, 1, suffix)
        out = pl.pallas_call(
            _bcast_sublane_kernel,
            out_shape=jax.ShapeDtypeStruct((prefix, dim_size, suffix), x.dtype),
            grid=grid,
            in_specs=[pl.BlockSpec((tp, 1, suffix), lambda i: (i, 0, 0))],
            out_specs=pl.BlockSpec((tp, dim_size, suffix), lambda i: (i, 0, 0)),
            compiler_params=cparams,
        )(x3)
    elif suffix == 1:
        # New axis is the last axis: put dim_size on lanes.
        x2 = x.reshape(prefix, 1)
        out = pl.pallas_call(
            _bcast_lane_kernel,
            out_shape=jax.ShapeDtypeStruct((prefix, dim_size), x.dtype),
            grid=grid,
            in_specs=[pl.BlockSpec((tp, 1), lambda i: (i, 0))],
            out_specs=pl.BlockSpec((tp, dim_size), lambda i: (i, 0))        ,
            compiler_params=cparams,
        )(x2)
    else:
        # Small suffix: flatten (dim_size, suffix) onto lanes for a lane-dense out_spec.
        flat_w = dim_size * suffix
        x2 = x.reshape(prefix, suffix)
        out = pl.pallas_call(
            functools.partial(_tile_lane_kernel, dim_size=dim_size, suffix=suffix),
            out_shape=jax.ShapeDtypeStruct((prefix, flat_w), x.dtype),
            grid=grid,
            in_specs=[pl.BlockSpec((tp, suffix), lambda i: (i, 0))],
            out_specs=pl.BlockSpec((tp, flat_w), lambda i: (i, 0)),
            compiler_params=cparams,
        )(x2)

    return out.reshape(out_shape)


def expand_new_dimension_forward(*vals, dim_size, dim):
    """Mirror of ExpandNewDimension.forward: returns a tuple of expanded tensors."""
    # TODO(synk): tensors sharing (dtype, dim_size, pos) could be fused into one
    # pallas_call (concat along prefix) to amortize per-launch overhead.
    return tuple(_expand_one(v, dim_size, dim) for v in vals)


def expand_ref(x, dim_size, dim):
    """Pure-JAX reference mirroring the PyTorch module."""
    pos = dim % (x.ndim + 1)
    target = tuple(x.shape[:pos]) + (dim_size,) + tuple(x.shape[pos:])
    return jnp.broadcast_to(jnp.expand_dims(x, pos), target)


# --------------------------------- test ---------------------------------------

if __name__ == "__main__":
    key = jax.random.PRNGKey(0)
    k1, k2, k3, k4 = jax.random.split(key, 4)

    x = jax.random.normal(k1, (2, 4, 16, 16), dtype=jnp.float32)
    y = jax.random.normal(k2, (2, 8, 16), dtype=jnp.float32)
    z = jax.random.normal(k3, (11, 16, 128), dtype=jnp.float32)   # ragged prefix grid
    w = jax.random.normal(k4, (3, 50), dtype=jnp.float32)

    checks = [
        ((x, y), dict(dim_size=3, dim=1)),    # suffix >= 128 (sublane-broadcast path)
        ((x,),   dict(dim_size=5, dim=-1)),   # suffix == 1  (lane-broadcast path)
        ((y,),   dict(dim_size=3, dim=2)),    # 1 < suffix < 128 (lane-tile path)
        ((z,),   dict(dim_size=4, dim=1)),    # ragged last block, 3-D path
        ((w,),   dict(dim_size=7, dim=-1)),   # ragged last block, suffix == 1 path
    ]

    for vals, kw in checks:
        outs = jax.block_until_ready(expand_new_dimension_forward(*vals, **kw))
        for v, o in zip(vals, outs):
            r = expand_ref(v, kw["dim_size"], kw["dim"])
            assert o.shape == r.shape, (o.shape, r.shape)
            np.testing.assert_array_equal(np.asarray(o), np.asarray(r))

    print("KERNEL_OK")
</pallas_src>

<mosaic_0001>
module attributes {stable_mosaic.version = 11 : i64} {
  func.func @_bcast_sublane_kernel(%arg0: i32, %arg1: memref<1x1x1024xf32, #tpu.memory_space<vmem>>, %arg2: memref<1x3x1024xf32, #tpu.memory_space<vmem>>) attributes {dimension_semantics = [#tpu.dimension_semantics<parallel>], iteration_bounds = array<i64: 2>, scalar_prefetch = 0 : i64, scratch_operands = 0 : i64, tpu.core_type = #tpu.core_type<tc>, window_params = [{transform_indices = @transform_0, window_bounds = array<i64: 1, 1, 1024>}, {transform_indices = @transform_1, window_bounds = array<i64: 1, 3, 1024>}]} {
    %c0 = arith.constant 0 : index
    %c0_0 = arith.constant 0 : index
    %c0_1 = arith.constant 0 : index
    %0 = vector.load %arg1[%c0, %c0_0, %c0_1] : memref<1x1x1024xf32, #tpu.memory_space<vmem>>, vector<1x1x1024xf32>
    %1 = vector.shape_cast %0 : vector<1x1x1024xf32> to vector<1x1x1024xf32>
    %2 = vector.broadcast %1 : vector<1x1x1024xf32> to vector<1x3x1024xf32>
    %c0_2 = arith.constant 0 : index
    %c0_3 = arith.constant 0 : index
    %c0_4 = arith.constant 0 : index
    %3 = vector.load %arg2[%c0_2, %c0_3, %c0_4] : memref<1x3x1024xf32, #tpu.memory_space<vmem>>, vector<1x3x1024xf32>
    tpu.vector_store %arg2[%c0_2, %c0_3, %c0_4], %2 {strides = array<i32>} : memref<1x3x1024xf32, #tpu.memory_space<vmem>>, vector<1x3x1024xf32>,
    return
  }
  func.func @transform_0(%arg0: i32) -> (i32, i32, i32) {
    %c0_i32 = arith.constant 0 : i32
    %c0_i32_0 = arith.constant 0 : i32
    %c0_i32_1 = arith.constant 0 : i32
    return %arg0, %c0_i32, %c0_i32_0 : i32, i32, i32
  }
  func.func @transform_1(%arg0: i32) -> (i32, i32, i32) {
    %c0_i32 = arith.constant 0 : i32
    %c0_i32_0 = arith.constant 0 : i32
    %c0_i32_1 = arith.constant 0 : i32
    return %arg0, %c0_i32, %c0_i32_0 : i32, i32, i32
  }
}

</mosaic_0001>

<llo_original>
// kernel: tpu_custom_call.1
$region0: #{tpu_custom_call.1}
  #allocation0 [shape = 'u32[]', space=smem, size = 0x4, offset = 0x4, fixed_abs, tag = 'smem constant byte address 0x4 - core index']
  #allocation1 [shape = 'u32[144,128]{1,0:T(1,128)}', space=vmem, size = 0x12000, scoped, tag = 'internal scratch']
  %s0 = inlined_call_operand.hbm [shape: f32[2,1,1024], index: 0, kind: input, shape index: {}]
  %s1 = inlined_call_operand.vmem [shape: f32[2,3,1024], index: 1, kind: output, shape index: {}]
  %s2 = sld [smem:[#allocation0]]
  $region41: #{tpu_custom_call.1} parent=0
    _
  %s4 = ssub.s32 1, %s2
  %s5 = scalar_select 0, %s4, %s2
  $region1: #{tpu_custom_call.1} parent=0
    #allocation2 [shape = 'u8[8192]{0}', space=vmem, size = 0x2000, scoped, tag = 'input window, operand 0']
    #allocation3 [shape = 's32[2]{0}', space=sflag, size = 0x8, scoped, tag = 'scoped memory for tpu_custom_call.1']
    %6 = vsyncpa [#allocation3], 0
    %s7 = scalar_lea.sflag [#allocation3], 1
    %8 = vsyncpa %s7, 0
    loop: start=0, step=1, limit=4
    $region2: #{tpu_custom_call.1} parent=1 // loop_pre_header
      _
    $region3: #{tpu_custom_call.1} parent=1 // loop_header
      %s10 = sphi 0, %s14
      %p11 = scmp.ge.s32.totalorder %s10, 4
      %s20 = sphi 0, %s22
      %s23 = sphi 0, %s20
      %s24 = sphi 0, %s23
      %s40 = sphi 0, %s24
      %s46 = sphi 0, %s48
      %s49 = sphi 0, %s46
      %s50 = sphi 0, %s49
      %s66 = sphi 0, %s50
    $region4: #{tpu_custom_call.1} parent=1 // loop_header_branch
      %13 = sbr.rel (%p11) target = $region8
    $region5: #{tpu_custom_call.1} parent=1 // loop_body
      %s15 = ssub.s32 %s10, 1
      %s16 = ssub.s32 %s10, 2
      %s17 = sadd.s32 %s10, 1
      %s18 = ssub.s32 %s10, %s17
      %p19 = scmp.eq.s32.totalorder %s18, 0
      %s21 = sadd.s32 %s20, 1
      %s22 = scalar_select %p19, %s20, %s21
      %p25 = pneg %p19
      %p26 = scmp.eq.s32.totalorder %s10, 1
      %p27 = por %p25, %p26
      %p28 = scmp.ne.s32.totalorder %s20, %s23
      %p29 = scmp.eq.s32.totalorder %s10, 0
      %p30 = por %p28, %p29
      %p31 = scmp.ne.s32.totalorder %s20, %s23
      %p32 = scmp.eq.s32.totalorder %s15, 1
      %p33 = por %p31, %p32
      %p34 = scmp.ne.s32.totalorder %s23, %s24
      %p35 = scmp.eq.s32.totalorder %s15, 0
      %p36 = por %p34, %p35
      %p37 = scmp.ne.s32.totalorder %s23, %s24
      %p38 = scmp.eq.s32.totalorder %s16, 1
      %p39 = por %p37, %p38
      %p41 = scmp.ne.s32.totalorder %s24, %s40
      %p42 = scmp.eq.s32.totalorder %s16, 0
      %p43 = por %p41, %p42
      %s44 = ssub.s32 %s10, %s17
      %p45 = scmp.eq.s32.totalorder %s44, 0
      %s47 = sadd.s32 %s46, 1
      %s48 = scalar_select %p45, %s46, %s47
      %p51 = pneg %p45
      %p52 = scmp.eq.s32.totalorder %s10, 1
      %p53 = por %p51, %p52
      %p54 = scmp.ne.s32.totalorder %s46, %s49
      %p55 = scmp.eq.s32.totalorder %s10, 0
      %p56 = por %p54, %p55
      %p57 = scmp.ne.s32.totalorder %s46, %s49
      %p58 = scmp.eq.s32.totalorder %s15, 1
      %p59 = por %p57, %p58
      %p60 = scmp.ne.s32.totalorder %s49, %s50
      %p61 = scmp.eq.s32.totalorder %s15, 0
      %p62 = por %p60, %p61
      %p63 = scmp.ne.s32.totalorder %s49, %s50
      %p64 = scmp.eq.s32.totalorder %s16, 1
      %p65 = por %p63, %p64
      %p67 = scmp.ne.s32.totalorder %s50, %s66
      %p68 = scmp.eq.s32.totalorder %s16, 0
      %p69 = por %p67, %p68
      %p70 = scmp.le.s32.totalorder 1, %s10
      %p71 = scmp.lt.s32.totalorder %s10, 3
      %p72 = pnand %p70, %p71
      %p73 = pneg %p72
      // Predicated region
      $region9: #{tpu_custom_call.1} parent=5 // pred_check
        _
      $region10: #{tpu_custom_call.1} parent=5 // pred_check_branch
        %75 = sbr.rel (%p72) target = $region12
      $region11: #{tpu_custom_call.1} parent=5 // pred_region
        %s76 = ssub.s32 %s10, 1
      $region12: #{tpu_custom_call.1} parent=5 // pred_fallthru
        _
      %p77 = scmp.lt.s32.totalorder %s10, 2
      // Predicated region
      $region13: #{tpu_custom_call.1} parent=5 // pred_check
        %p78 = pneg %p77
      $region14: #{tpu_custom_call.1} parent=5 // pred_check_branch
        %80 = sbr.rel (%p78) target = $region16
      $region15: #{tpu_custom_call.1} parent=5 // pred_region
        // Predicated region
        $region17: #{tpu_custom_call.1} parent=15 // pred_check
          %p81 = pneg %p30
        $region18: #{tpu_custom_call.1} parent=15 // pred_check_branch
          %83 = sbr.rel (%p81) target = $region20
        $region19: #{tpu_custom_call.1} parent=15 // pred_region
          %s84 = sand.u32 %s20, 1
          %s85 = scalar_lea.sflag [#allocation3], %s84
          %s86 = sand.u32 %s20, 1
          %s87 = smul.addr %s86, 8
          %s88 = scalar_lea.vmem [#allocation2], %s87
          %s90 = ssub.s32 128, 128
          %91 = vsyncadd %s85, %s90
          %s92 = smul.addr %s10, 8
          %s93 = smul.addr %s92, 16
          %s94 = scalar_lea.hbm %s0, %s93
          %s96 = sshll.u32 %s88, 4
          %s97 = int_to_ptr.vmem [resolvable:$true] %s96
          %99 = dma.hbm_to_vmem [thread:$0]  %s94, 128, %s97, %s85
        $region20: #{tpu_custom_call.1} parent=15 // pred_fallthru
          _
      $region16: #{tpu_custom_call.1} parent=5 // pred_fallthru
        _
      %p100 = scmp.le.s32.totalorder 1, %s10
      %p101 = scmp.lt.s32.totalorder %s10, 3
      %p102 = pnand %p100, %p101
      %p103 = pneg %p102
      // Predicated region
      $region21: #{tpu_custom_call.1} parent=5 // pred_check
        _
      $region22: #{tpu_custom_call.1} parent=5 // pred_check_branch
        %105 = sbr.rel (%p102) target = $region24
      $region23: #{tpu_custom_call.1} parent=5 // pred_region
        %s106 = ssub.s32 %s10, 1
        %s107 = sand.u32 %s23, 1
        %s108 = scalar_lea.sflag [#allocation3], %s107
        %s109 = sand.u32 %s23, 1
        %s110 = smul.addr %s109, 8
        %s111 = scalar_lea.vmem [#allocation2], %s110
        // Predicated region
        $region25: #{tpu_custom_call.1} parent=23 // pred_check
          %p112 = pneg %p36
        $region26: #{tpu_custom_call.1} parent=23 // pred_check_branch
          %114 = sbr.rel (%p112) target = $region28
        $region27: #{tpu_custom_call.1} parent=23 // pred_region
          %115 = dma.done %s108, 128
        $region28: #{tpu_custom_call.1} parent=23 // pred_fallthru
          _
        %s116 = sand.u32 %s23, 1
        %s117 = scalar_lea.sflag [#allocation3], %s116
        %s118 = sand.u32 %s23, 1
        %s119 = smul.addr %s118, 8
        %s120 = scalar_lea.vmem [#allocation2], %s119
        %p121 = pneg %p36
        %p122 = pneg %p33
        %p123 = pneg %p62
        %p124 = pneg %p59
        %p125 = scmp.lt.s32.totalorder %s15, 1
        %s126 = scalar_select %p125, %s15, 1
        %s127 = smul.addr %s126, 8
        %s128 = smul.addr %s127, 4
        %s129 = scalar_lea.vmem %s1, %s128
        %p130 = scmp.lt.s32.totalorder %s15, 1
        %s131 = scalar_select %p130, %s15, 1
        %s132 = smul.addr %s131, 8
        %s133 = smul.addr %s132, 4
        %s134 = scalar_lea.vmem %s1, %s133
        %v135 = vld [vmem:[%s111] sm:$0xff]
        %v137 = vlaneseq
        %v138 = vshrl.u32 %v137, 7
        %v139 = vsub.s32 0, %v138
        %v140 = vrot.slane %v135, %v139
        %v141 = vlaneseq
        %v142 = vshrl.u32 %v141, 7
        %v143 = vsub.s32 1, %v142
        %v144 = vrot.slane %v135, %v143
        %v145 = vlaneseq
        %v146 = vshrl.u32 %v145, 7
        %v147 = vsub.s32 2, %v146
        %v148 = vrot.slane %v135, %v147
        %v149 = vlaneseq
        %v150 = vshrl.u32 %v149, 7
        %v151 = vsub.s32 3, %v150
        %v152 = vrot.slane %v135, %v151
        %v153 = vlaneseq
        %v154 = vshrl.u32 %v153, 7
        %v155 = vsub.s32 4, %v154
        %v156 = vrot.slane %v135, %v155
        %v157 = vlaneseq
        %v158 = vshrl.u32 %v157, 7
        %v159 = vsub.s32 5, %v158
        %v160 = vrot.slane %v135, %v159
        %v161 = vlaneseq
        %v162 = vshrl.u32 %v161, 7
        %v163 = vsub.s32 6, %v162
        %v164 = vrot.slane %v135, %v163
        %v165 = vlaneseq
        %v166 = vshrl.u32 %v165, 7
        %v167 = vsub.s32 7, %v166
        %v168 = vrot.slane %v135, %v167
        %v169 = vcombine.low %v140, %v144
        %v170 = vcombine.low %v148, %v152
        %v171 = vcombine.low %v156, %v160
        %v172 = vcombine.low %v164, %v168
        %177 = vst [vmem:[%s134] sm:$0x77] %v169
        %178 = vst [vmem:[%s134 + $0x8] sm:$0x77] %v170
        %179 = vst [vmem:[%s134 + $0x10] sm:$0x77] %v171
        %180 = vst [vmem:[%s134 + $0x18] sm:$0x77] %v172
        %p181 = scmp.lt.s32.totalorder %s15, 1
        %s182 = scalar_select %p181, %s15, 1
        %s183 = smul.addr %s182, 8
        %s184 = smul.addr %s183, 4
        %s185 = scalar_lea.vmem %s1, %s184
        // Predicated region
        $region29: #{tpu_custom_call.1} parent=23 // pred_check
          %p186 = pneg %p59
        $region30: #{tpu_custom_call.1} parent=23 // pred_check_branch
          %188 = sbr.rel (%p186) target = $region32
        $region31: #{tpu_custom_call.1} parent=23 // pred_region
          _
        $region32: #{tpu_custom_call.1} parent=23 // pred_fallthru
          _
      $region24: #{tpu_custom_call.1} parent=5 // pred_fallthru
        _
      %p189 = scmp.le.s32.totalorder 2, %s10
      // Predicated region
      $region33: #{tpu_custom_call.1} parent=5 // pred_check
        %p190 = pneg %p189
      $region34: #{tpu_custom_call.1} parent=5 // pred_check_branch
        %192 = sbr.rel (%p190) target = $region36
      $region35: #{tpu_custom_call.1} parent=5 // pred_region
        %s193 = ssub.s32 %s10, 2
        // Predicated region
        $region37: #{tpu_custom_call.1} parent=35 // pred_check
          %p194 = pneg %p65
        $region38: #{tpu_custom_call.1} parent=35 // pred_check_branch
          %196 = sbr.rel (%p194) target = $region40
        $region39: #{tpu_custom_call.1} parent=35 // pred_region
          %p197 = scmp.lt.s32.totalorder %s16, 1
          %s198 = scalar_select %p197, %s16, 1
          %s199 = smul.addr %s198, 8
          %s200 = smul.addr %s199, 4
          %s201 = scalar_lea.vmem %s1, %s200
        $region40: #{tpu_custom_call.1} parent=35 // pred_fallthru
          _
      $region36: #{tpu_custom_call.1} parent=5 // pred_fallthru
        _
    $region6: #{tpu_custom_call.1} parent=1 // loop_footer
      %s14 = sadd.s32 1, %s10
    $region7: #{tpu_custom_call.1} parent=1 // loop_footer_branch
      %9 = sbr.rel target = $region3
    $region8: #{tpu_custom_call.1} parent=1 // loop_exit
      _
    %202 = vsyncpa [#allocation3], 1
    %s203 = scalar_lea.sflag [#allocation3], 1
    %204 = vsyncpa %s203, 1

</llo_original>
